<compile_context>
chip_gen: v7x
topology: tpu7x:2x2x1
jax: 0.10.0
libtpu: 0.0.40
codegen_flags: <defaults>
</compile_context>

<pallas_src>
import numpy as np
import jax
import jax.numpy as jnp
from jax import lax
from jax.experimental import pallas as pl
from jax.experimental.pallas import tpu as pltpu

CLIP_RES = 224
PATCH = 32
PGRID = CLIP_RES // PATCH          # 7x7 patch grid
EMBED_D = 32                       # synthetic CLIP feature dim
TOK_E = 32                         # synthetic token embedding dim
VOCAB = 64

IMAGE_MEAN = (0.48145466, 0.4578275, 0.40821073)
IMAGE_STD = (0.26862954, 0.26130258, 0.27577711)

# Fold (x+1)/2, -mean, /std into a single per-channel  scale*x + bias.
_PRE_SCALE = tuple(0.5 / s for s in IMAGE_STD)
_PRE_BIAS = tuple((0.5 - m) / s for m, s in zip(IMAGE_MEAN, IMAGE_STD))


# ----------------------- parameter folding (wrapper, O(params)) -------------

def _nearest_src_idx(in_size):
    # torch F.interpolate(image, size=224) default 'nearest':
    #   src = floor(dst * in_size / out_size)
    return np.floor(np.arange(CLIP_RES) * (in_size / CLIP_RES)).astype(np.int64)


def _resize_pool_matrices(H, W):
    """Per-axis matrices folding nearest-resize-to-224 + 7x7 patch-mean pool.

    mean_patch[r, p] = sum_{h,w} B_h[r, h] * x[h, w] * B_w[w, p]
    (the mean over the 49 patches of the pixel at in-patch offset (r, p),
    computed directly from the ORIGINAL [H, W] image).
    """
    src_h = _nearest_src_idx(H)
    src_w = _nearest_src_idx(W)
    B_h = np.zeros((PATCH, H), np.float32)   # [32, H]
    B_w = np.zeros((W, PATCH), np.float32)   # [W, 32]
    for i in range(CLIP_RES):
        B_h[i % PATCH, src_h[i]] += 1.0 / PGRID
    for j in range(CLIP_RES):
        B_w[src_w[j], j % PATCH] += 1.0 / PGRID
    return B_h, B_w


def _fold_image_tower(params, C, H, W):
    """Fold resize + preprocess scale + patch-mean pool + patch embed + image
    projection into a single affine map:

        image_features = clamp(x).reshape(Y, C*H*W) @ W_img + b_img

    Exact by linearity (valid for this synthetic linear encoder; a real CLIP
    ViT could not be folded like this).  Done once per call in XLA.
    """
    B_h, B_w = _resize_pool_matrices(H, W)
    hi = lax.Precision.HIGHEST
    w_comb = jnp.matmul(params["w_patch"], params["w_img_proj"], precision=hi)
    w_comb = w_comb.reshape(C, PATCH, PATCH, -1)                   # [C,32,32,D]
    # M[c,h,w,d] = sum_{r,p} B_h[r,h] * B_w[w,p] * w_comb[c,r,p,d]
    m = jnp.einsum("rh,wp,crpd->chwd", B_h, B_w, w_comb, precision=hi)
    scale = jnp.asarray(_PRE_SCALE, jnp.float32)
    bias = jnp.asarray(_PRE_BIAS, jnp.float32)
    w_img = (m * scale[:, None, None, None]).reshape(C * H * W, -1)  # [CHW, D]
    b_img = jnp.einsum("chwd,c->d", m, bias, precision=hi)[None, :]  # [1, D]
    return w_img, b_img


# ------------------ kernel A: text projection + L2 normalize ----------------

def _text_encode_kernel(p_ref, w_ref, o_ref):
    t = jnp.dot(p_ref[...], w_ref[...], preferred_element_type=jnp.float32)
    o_ref[...] = t * lax.rsqrt(jnp.sum(t * t, axis=-1, keepdims=True) + 1e-12)


def encode_text(pooled_txt, w_text_proj):
    """One-shot kernel (hoisted out of the Y-tiled grid, computed once)."""
    X, E = pooled_txt.shape
    D = w_text_proj.shape[1]
    return pl.pallas_call(
        _text_encode_kernel,
        out_shape=jax.ShapeDtypeStruct((X, D), jnp.float32),
        grid=(1,),
        in_specs=[pl.BlockSpec((X, E), lambda i: (0, 0)),
                  pl.BlockSpec((E, D), lambda i: (0, 0))],
        out_specs=pl.BlockSpec((X, D), lambda i: (0, 0)),
    )(pooled_txt.astype(jnp.float32), w_text_proj.astype(jnp.float32))


# ------ kernel B: clamp + folded image tower + normalize + similarity -------

def _image_sim_kernel(x_ref, w_ref, b_ref, t_ref, o_ref):
    # x_ref: [ty, C*H*W] raw pixels (all channels batched into the block)
    # w_ref/b_ref: folded image tower; t_ref: [X, D] pre-normalized text feats.
    x = jnp.clip(x_ref[...], -1.0, 1.0)
    img = jnp.dot(x, w_ref[...], preferred_element_type=jnp.float32) + b_ref[...]
    img_n = img * lax.rsqrt(jnp.sum(img * img, axis=-1, keepdims=True) + 1e-12)
    # logits_per_text block = txt_n @ img_n.T (contract last dims, no transpose)
    o_ref[...] = lax.dot_general(
        t_ref[...], img_n, (((1,), (1,)), ((), ())),
        preferred_element_type=jnp.float32)


def _pick_tile_y(Y, row_bytes, budget=8 << 20):
    """Images per grid step.  Whole-Y when small; otherwise a multiple of 128
    (keeps the [X, ty] output block layout-legal and lane-dense) sized so the
    double-buffered image block stays under ~8 MiB (safe for v5e's 16 MiB
    scoped-VMEM default and v7x's 64 MiB physical VMEM) and so the grid has
    >= 2 parallel steps for the v7x megacore when Y is large enough to split.
    """
    if Y <= 128 or (Y <= 256 and Y * row_bytes * 2 <= budget):
        return Y
    ty = 128
    while ty * 2 < Y and ty * 2 <= 1024 and (ty * 2) * row_bytes * 2 <= budget:
        ty *= 2
    return ty


def image_text_similarity(img_flat, w_img, b_img, txt_n):
    """[X, Y] logits_per_text from raw flattened pixels, fully fused."""
    Y, F = img_flat.shape
    D = w_img.shape[1]
    X = txt_n.shape[0]
    ty = _pick_tile_y(Y, F * 4)

    # Raise the scoped-VMEM limit only when the chosen blocks actually need it
    # (stay below v7x's 64 MiB physical VMEM).
    block_bytes = 4 * (2 * ty * F + F * D + D + X * D + 2 * X * ty)
    vmem_limit = None
    if block_bytes * 5 // 4 > (16 << 20):
        vmem_limit = int(min(block_bytes * 5 // 4, 64 << 20))

    return pl.pallas_call(
        _image_sim_kernel,
        out_shape=jax.ShapeDtypeStruct((X, Y), jnp.float32),
        grid=(pl.cdiv(Y, ty),),
        in_specs=[
            pl.BlockSpec((ty, F), lambda j: (j, 0)),   # image tile (pipelined)
            pl.BlockSpec((F, D), lambda j: (0, 0)),    # folded weight (resident)
            pl.BlockSpec((1, D), lambda j: (0, 0)),    # folded bias   (resident)
            pl.BlockSpec((X, D), lambda j: (0, 0)),    # normalized text feats
        ],
        out_specs=pl.BlockSpec((X, ty), lambda j: (0, j)),
        compiler_params=pltpu.CompilerParams(
            dimension_semantics=("parallel",),
            vmem_limit_bytes=vmem_limit),
    )(img_flat, w_img, b_img, txt_n)


# ------------------------------- glue (JAX) ---------------------------------

def clip_similarity(tokens, image, params):
    """Returns logits_per_text: [X, Y] (text x image), logit_scale = 1.0."""
    Y, C, H, W = image.shape
    assert C == 3, "CLIP preprocessing expects 3-channel images"

    # TODO(synk): the pretrained CLIP visual transformer is not reimplemented;
    # a synthetic (linear) patch-embed + mean-pool + projection stands in, so
    # resize/preprocess/pool/embed/proj fold exactly into one affine map.
    w_img, b_img = _fold_image_tower(params, C, H, W)       # [C*H*W, D], [1, D]
    img_flat = image.astype(jnp.float32).reshape(Y, C * H * W)

    # TODO(synk): clip.tokenize + the pretrained CLIP text transformer are not
    # reimplemented; pre-tokenized ids -> embedding gather (XLA) + mean pool.
    pooled_txt = params["tok_emb"][tokens].mean(axis=1)      # [X, E]
    txt_n = encode_text(pooled_txt, params["w_text_proj"])   # [X, D]

    return image_text_similarity(img_flat, w_img, b_img, txt_n)   # [X, Y]


# ----------------------- pure-JAX reference (unfused) -----------------------

def _reference(tokens, image, params):
    Y, C, H, W = image.shape
    hi = lax.Precision.HIGHEST
    src_h, src_w = _nearest_src_idx(H), _nearest_src_idx(W)
    x = image.astype(jnp.float32)[:, :, src_h, :][:, :, :, src_w]
    x = (jnp.clip(x, -1.0, 1.0) + 1.0) / 2.0
    x = (x - jnp.asarray(IMAGE_MEAN, jnp.float32)[None, :, None, None]) \
        / jnp.asarray(IMAGE_STD, jnp.float32)[None, :, None, None]
    x = x.reshape(Y, C, PGRID, PATCH, PGRID, PATCH)
    patches = x.transpose(0, 2, 4, 1, 3, 5).reshape(
        Y, PGRID * PGRID, C * PATCH * PATCH)
    emb = jnp.einsum("ypk,kd->ypd", patches, params["w_patch"], precision=hi)
    img = jnp.einsum("yd,de->ye", emb.mean(axis=1), params["w_img_proj"],
                     precision=hi)
    img = img / jnp.linalg.norm(img, axis=-1, keepdims=True)
    txt = jnp.einsum("xe,ed->xd", params["tok_emb"][tokens].mean(axis=1),
                     params["w_text_proj"], precision=hi)
    txt = txt / jnp.linalg.norm(txt, axis=-1, keepdims=True)
    return txt @ img.T


# ---------------------------------- main ------------------------------------

if __name__ == "__main__":
    key = jax.random.PRNGKey(0)
    k_img, k_tok, k1, k2, k3, k4 = jax.random.split(key, 6)

    X, Y, L = 4, 2, 8
    image = jax.random.uniform(k_img, (Y, 3, 16, 16), jnp.float32,
                               minval=-1.2, maxval=1.2)
    tokens = jax.random.randint(k_tok, (X, L), 0, VOCAB)

    params = {
        "w_patch": 0.02 * jax.random.normal(
            k1, (3 * PATCH * PATCH, EMBED_D), jnp.float32),
        "w_img_proj": 0.02 * jax.random.normal(
            k2, (EMBED_D, EMBED_D), jnp.float32),
        "tok_emb": 0.02 * jax.random.normal(
            k3, (VOCAB, TOK_E), jnp.float32),
        "w_text_proj": 0.02 * jax.random.normal(
            k4, (TOK_E, EMBED_D), jnp.float32),
    }

    sim = jax.jit(clip_similarity)(tokens, image, params)
    jax.block_until_ready(sim)
    assert sim.shape == (X, Y)
    assert sim.dtype == jnp.float32
    assert bool(jnp.all(jnp.isfinite(sim)))

    # Sanity check the folded/fused path against the unfused pure-JAX reference
    # (loose tolerance: MXU default-precision matmuls vs HIGHEST in the ref).
    ref = _reference(tokens, image, params)
    assert bool(jnp.allclose(sim, ref, atol=2e-2)), \
        float(jnp.max(jnp.abs(sim - ref)))
    print("KERNEL_OK")
</pallas_src>

<mosaic_0001>
module attributes {stable_mosaic.version = 11 : i64} {
  func.func @_text_encode_kernel(%arg0: i32, %arg1: memref<4x32xf32, #tpu.memory_space<vmem>>, %arg2: memref<32x32xf32, #tpu.memory_space<vmem>>, %arg3: memref<4x32xf32, #tpu.memory_space<vmem>>) attributes {dimension_semantics = [#tpu.dimension_semantics<arbitrary>], iteration_bounds = array<i64: 1>, scalar_prefetch = 0 : i64, scratch_operands = 0 : i64, tpu.core_type = #tpu.core_type<tc>, window_params = [{pipeline_mode = #tpu.pipeline_mode<synchronous>, transform_indices = @transform_0, window_bounds = array<i64: 4, 32>}, {pipeline_mode = #tpu.pipeline_mode<synchronous>, transform_indices = @transform_1, window_bounds = array<i64: 32, 32>}, {pipeline_mode = #tpu.pipeline_mode<synchronous>, transform_indices = @transform_2, window_bounds = array<i64: 4, 32>}]} {
    %c0 = arith.constant 0 : index
    %c0_0 = arith.constant 0 : index
    %0 = vector.load %arg1[%c0, %c0_0] : memref<4x32xf32, #tpu.memory_space<vmem>>, vector<4x32xf32>
    %c0_1 = arith.constant 0 : index
    %c0_2 = arith.constant 0 : index
    %1 = vector.load %arg2[%c0_1, %c0_2] : memref<32x32xf32, #tpu.memory_space<vmem>>, vector<32x32xf32>
    %cst = arith.constant dense<0.000000e+00> : vector<4x32xf32>
    %2 = tpu.matmul %0, %1, %cst {dimension_numbers = #tpu.dot_dimension_numbers<[1], [0], [0], [1], [0, 0, 1, 1], [], []>} : vector<4x32xf32>, vector<32x32xf32>, vector<4x32xf32> -> vector<4x32xf32>
    %3 = arith.mulf %2, %2 : vector<4x32xf32>
    %cst_3 = arith.constant dense<0.000000e+00> : vector<4xf32>
    %4 = vector.multi_reduction <add>, %3, %cst_3 [1] : vector<4x32xf32> to vector<4xf32>
    %5 = vector.shape_cast %4 : vector<4xf32> to vector<4x1xf32>
    %cst_4 = arith.constant 9.99999996E-13 : f32
    %6 = vector.broadcast %cst_4 : f32 to vector<4x1xf32>
    %7 = arith.addf %5, %6 : vector<4x1xf32>
    %8 = math.rsqrt %7 : vector<4x1xf32>
    %9 = vector.broadcast %8 : vector<4x1xf32> to vector<4x32xf32>
    %10 = arith.mulf %2, %9 : vector<4x32xf32>
    %c0_5 = arith.constant 0 : index
    %c0_6 = arith.constant 0 : index
    %11 = vector.load %arg3[%c0_5, %c0_6] : memref<4x32xf32, #tpu.memory_space<vmem>>, vector<4x32xf32>
    tpu.vector_store %arg3[%c0_5, %c0_6], %10 {strides = array<i32>} : memref<4x32xf32, #tpu.memory_space<vmem>>, vector<4x32xf32>,
    return
  }
  func.func @transform_0(%arg0: i32) -> (i32, i32) {
    %c0_i32 = arith.constant 0 : i32
    %c0_i32_0 = arith.constant 0 : i32
    %c0_i32_1 = arith.constant 0 : i32
    return %c0_i32, %c0_i32_0 : i32, i32
  }
  func.func @transform_1(%arg0: i32) -> (i32, i32) {
    %c0_i32 = arith.constant 0 : i32
    %c0_i32_0 = arith.constant 0 : i32
    %c0_i32_1 = arith.constant 0 : i32
    return %c0_i32, %c0_i32_0 : i32, i32
  }
  func.func @transform_2(%arg0: i32) -> (i32, i32) {
    %c0_i32 = arith.constant 0 : i32
    %c0_i32_0 = arith.constant 0 : i32
    %c0_i32_1 = arith.constant 0 : i32
    return %c0_i32, %c0_i32_0 : i32, i32
  }
}

module attributes {stable_mosaic.version = 11 : i64} {
  func.func @_image_sim_kernel(%arg0: i32, %arg1: memref<2x768xf32, #tpu.memory_space<vmem>>, %arg2: memref<768x32xf32, #tpu.memory_space<vmem>>, %arg3: memref<1x32xf32, #tpu.memory_space<vmem>>, %arg4: memref<4x32xf32, #tpu.memory_space<vmem>>, %arg5: memref<4x2xf32, #tpu.memory_space<vmem>>) attributes {dimension_semantics = [#tpu.dimension_semantics<parallel>], iteration_bounds = array<i64: 1>, scalar_prefetch = 0 : i64, scratch_operands = 0 : i64, tpu.core_type = #tpu.core_type<tc>, window_params = [{transform_indices = @transform_0, window_bounds = array<i64: 2, 768>}, {pipeline_mode = #tpu.pipeline_mode<synchronous>, transform_indices = @transform_1, window_bounds = array<i64: 768, 32>}, {pipeline_mode = #tpu.pipeline_mode<synchronous>, transform_indices = @transform_2, window_bounds = array<i64: 1, 32>}, {pipeline_mode = #tpu.pipeline_mode<synchronous>, transform_indices = @transform_3, window_bounds = array<i64: 4, 32>}, {transform_indices = @transform_4, window_bounds = array<i64: 4, 2>}]} {
    %c0 = arith.constant 0 : index
    %c0_0 = arith.constant 0 : index
    %0 = vector.load %arg1[%c0, %c0_0] : memref<2x768xf32, #tpu.memory_space<vmem>>, vector<2x768xf32>
    %cst = arith.constant -1.000000e+00 : f32
    %cst_1 = arith.constant 1.000000e+00 : f32
    %1 = vector.broadcast %cst : f32 to vector<2x768xf32>
    %2 = arith.maximumf %1, %0 : vector<2x768xf32>
    %3 = vector.broadcast %cst_1 : f32 to vector<2x768xf32>
    %4 = arith.minimumf %3, %2 : vector<2x768xf32>
    %c0_2 = arith.constant 0 : index
    %c0_3 = arith.constant 0 : index
    %5 = vector.load %arg2[%c0_2, %c0_3] : memref<768x32xf32, #tpu.memory_space<vmem>>, vector<768x32xf32>
    %cst_4 = arith.constant dense<0.000000e+00> : vector<2x32xf32>
    %6 = tpu.matmul %4, %5, %cst_4 {dimension_numbers = #tpu.dot_dimension_numbers<[1], [0], [0], [1], [0, 0, 1, 1], [], []>} : vector<2x768xf32>, vector<768x32xf32>, vector<2x32xf32> -> vector<2x32xf32>
    %c0_5 = arith.constant 0 : index
    %c0_6 = arith.constant 0 : index
    %7 = vector.load %arg3[%c0_5, %c0_6] : memref<1x32xf32, #tpu.memory_space<vmem>>, vector<1x32xf32>
    %8 = vector.broadcast %7 : vector<1x32xf32> to vector<2x32xf32>
    %9 = arith.addf %6, %8 : vector<2x32xf32>
    %10 = arith.mulf %9, %9 : vector<2x32xf32>
    %cst_7 = arith.constant dense<0.000000e+00> : vector<2xf32>
    %11 = vector.multi_reduction <add>, %10, %cst_7 [1] : vector<2x32xf32> to vector<2xf32>
    %12 = vector.shape_cast %11 : vector<2xf32> to vector<2x1xf32>
    %cst_8 = arith.constant 9.99999996E-13 : f32
    %13 = vector.broadcast %cst_8 : f32 to vector<2x1xf32>
    %14 = arith.addf %12, %13 : vector<2x1xf32>
    %15 = math.rsqrt %14 : vector<2x1xf32>
    %16 = vector.broadcast %15 : vector<2x1xf32> to vector<2x32xf32>
    %17 = arith.mulf %9, %16 : vector<2x32xf32>
    %c0_9 = arith.constant 0 : index
    %c0_10 = arith.constant 0 : index
    %18 = vector.load %arg4[%c0_9, %c0_10] : memref<4x32xf32, #tpu.memory_space<vmem>>, vector<4x32xf32>
    %cst_11 = arith.constant dense<0.000000e+00> : vector<4x2xf32>
    %19 = tpu.matmul %18, %17, %cst_11 {dimension_numbers = #tpu.dot_dimension_numbers<[1], [1], [0], [0], [0, 0, 1, 0], [], []>} : vector<4x32xf32>, vector<2x32xf32>, vector<4x2xf32> -> vector<4x2xf32>
    %c0_12 = arith.constant 0 : index
    %c0_13 = arith.constant 0 : index
    %20 = vector.load %arg5[%c0_12, %c0_13] : memref<4x2xf32, #tpu.memory_space<vmem>>, vector<4x2xf32>
    tpu.vector_store %arg5[%c0_12, %c0_13], %19 {strides = array<i32>} : memref<4x2xf32, #tpu.memory_space<vmem>>, vector<4x2xf32>,
    return
  }
  func.func @transform_0(%arg0: i32) -> (i32, i32) {
    %c0_i32 = arith.constant 0 : i32
    %c0_i32_0 = arith.constant 0 : i32
    return %arg0, %c0_i32 : i32, i32
  }
  func.func @transform_1(%arg0: i32) -> (i32, i32) {
    %c0_i32 = arith.constant 0 : i32
    %c0_i32_0 = arith.constant 0 : i32
    %c0_i32_1 = arith.constant 0 : i32
    return %c0_i32, %c0_i32_0 : i32, i32
  }
  func.func @transform_2(%arg0: i32) -> (i32, i32) {
    %c0_i32 = arith.constant 0 : i32
    %c0_i32_0 = arith.constant 0 : i32
    %c0_i32_1 = arith.constant 0 : i32
    return %c0_i32, %c0_i32_0 : i32, i32
  }
  func.func @transform_3(%arg0: i32) -> (i32, i32) {
    %c0_i32 = arith.constant 0 : i32
    %c0_i32_0 = arith.constant 0 : i32
    %c0_i32_1 = arith.constant 0 : i32
    return %c0_i32, %c0_i32_0 : i32, i32
  }
  func.func @transform_4(%arg0: i32) -> (i32, i32) {
    %c0_i32 = arith.constant 0 : i32
    %c0_i32_0 = arith.constant 0 : i32
    return %c0_i32, %arg0 : i32, i32
  }
}

</mosaic_0001>

<llo_original>
// kernel: clip_similarity.2
$region0: #{clip_similarity.2}
  #allocation0 [shape = 'u32[]', space=smem, size = 0x4, offset = 0x4, fixed_abs, tag = 'smem constant byte address 0x4 - core index']
  #allocation1 [shape = 'u32[144,128]{1,0:T(1,128)}', space=vmem, size = 0x12000, scoped, tag = 'internal scratch']
  %s0 = inlined_call_operand.vmem [shape: f32[4,32], index: 0, kind: input, shape index: {}]
  %s1 = inlined_call_operand.vmem [shape: f32[32,32], index: 1, kind: input, shape index: {}]
  %s2 = inlined_call_operand.vmem [shape: f32[4,32], index: 2, kind: output, shape index: {}]
  %s3 = sld [smem:[#allocation0]]
  $region18: #{clip_similarity.2} parent=0
    _
  %s5 = ssub.s32 1, %s3
  %s6 = scalar_select 0, %s5, %s3
  // Predicated region
  $region2: #{clip_similarity.2} parent=0 // pred_check
    _
  $region3: #{clip_similarity.2} parent=0 // pred_check_branch
    %8 = sbr.rel (0) target = $region5
  $region4: #{clip_similarity.2} parent=0 // pred_region
    _
  $region5: #{clip_similarity.2} parent=0 // pred_fallthru
    _
  // Predicated region
  $region6: #{clip_similarity.2} parent=0 // pred_check
    _
  $region7: #{clip_similarity.2} parent=0 // pred_check_branch
    %10 = sbr.rel (0) target = $region9
  $region8: #{clip_similarity.2} parent=0 // pred_region
    _
  $region9: #{clip_similarity.2} parent=0 // pred_fallthru
    _
  %v11 = vld [vmem:[%s0] sm:$0xf]
  %v12 = vld [vmem:[%s1] sm:$0xff]
  %v13 = vld [vmem:[%s1 + $0x8] sm:$0xff]
  %v14 = vld [vmem:[%s1 + $0x10] sm:$0xff]
  %v15 = vld [vmem:[%s1 + $0x18] sm:$0xff]
  %vm16 = vcmask 261120
  %v18 = vsel %vm16, %v11, 0
  %20 = vmatprep.subr.mxu0 0.0
  %21 = vmatpush1.msra.mxu0 %v12
  %22 = vmatprep.subr.mxu0 0.0
  %23 = vmatpush1.msra.mxu0 %v13
  %24 = vmatprep.subr.mxu0 0.0
  %25 = vmatpush1.msra.mxu0 %v14
  %26 = vmatprep.subr.mxu0 0.0
  %27 = vmatpush1.msra.mxu0 %v15
  %28 = vmatprep.subr.mxu0 0.0
  %29 = vmatpush1.msra.mxu0 0.0
  %30 = vmatprep.subr.mxu0 0.0
  %31 = vmatpush1.msra.mxu0 0.0
  %32 = vmatprep.subr.mxu0 0.0
  %33 = vmatpush1.msra.mxu0 0.0
  %34 = vmatprep.subr.mxu0 0.0
  %35 = vmatpush1.msra.mxu0 0.0
  %36 = vmatprep.subr.mxu0 0.0
  %37 = vmatpush1.msra.mxu0 0.0
  %38 = vmatprep.subr.mxu0 0.0
  %39 = vmatpush1.msra.mxu0 0.0
  %40 = vmatprep.subr.mxu0 0.0
  %41 = vmatpush1.msra.mxu0 0.0
  %42 = vmatprep.subr.mxu0 0.0
  %43 = vmatpush1.msra.mxu0 0.0
  %44 = vmatprep.subr.mxu0 0.0
  %45 = vmatpush1.msra.mxu0 0.0
  %46 = vmatprep.subr.mxu0 0.0
  %47 = vmatpush1.msra.mxu0 0.0
  %48 = vmatprep.subr.mxu0 0.0
  %49 = vmatpush1.msra.mxu0 0.0
  %50 = vmatprep.subr.mxu0 0.0
  %51 = vmatpush1.msra.mxu0 0.0
  %52 = vmatprep.subr.mxu0 0.0
  %53 = vmatpush1.msra.mxu0 0.0
  %54 = vmatprep.subr.mxu0 0.0
  %55 = vmatpush1.msra.mxu0 0.0
  %56 = vmatprep.subr.mxu0 0.0
  %57 = vmatpush1.msra.mxu0 0.0
  %58 = vmatprep.subr.mxu0 0.0
  %59 = vmatpush1.msra.mxu0 0.0
  %60 = vmatprep.subr.mxu0 0.0
  %61 = vmatpush1.msra.mxu0 0.0
  %62 = vmatprep.subr.mxu0 0.0
  %63 = vmatpush1.msra.mxu0 0.0
  %64 = vmatprep.subr.mxu0 0.0
  %65 = vmatpush1.msra.mxu0 0.0
  %66 = vmatprep.subr.mxu0 0.0
  %67 = vmatpush1.msra.mxu0 0.0
  %68 = vmatprep.subr.mxu0 0.0
  %69 = vmatpush1.msra.mxu0 0.0
  %70 = vmatprep.subr.mxu0 0.0
  %71 = vmatpush1.msra.mxu0 0.0
  %72 = vmatprep.subr.mxu0 0.0
  %73 = vmatpush1.msra.mxu0 0.0
  %74 = vmatprep.subr.mxu0 0.0
  %75 = vmatpush1.msra.mxu0 0.0
  %76 = vmatprep.subr.mxu0 0.0
  %77 = vmatpush1.msra.mxu0 0.0
  %78 = vmatprep.subr.mxu0 0.0
  %79 = vmatpush1.msra.mxu0 0.0
  %80 = vmatprep.subr.mxu0 0.0
  %81 = vmatpush1.msra.mxu0 0.0
  %82 = vmatprep.subr.mxu0 0.0
  %83 = vmatpush1.msra.mxu0 0.0
  %84 = vmatprep.mubr.f32.mxu0 0.0
  %85 = vmatmul.mubr.f32.gmra.mrb[0].mxu0 %v18
  %v86 = vpop.f32.mrb[0].mxu0
  %v87 = vadd.f32 0.0, %v86
  %v88 = vpop.f32.mrb[0].mxu0
  %89 = vdwg.mxu0
  %v90 = vmul.f32 %v87, %v87
  %vm91 = vcmask 257024
  %v92 = vsel %vm91, %v90, 0.0
  %93 = vadd.xlane.f32.xlu0 %v92
  %v94 = vpop.xlane.xlu0 %93
  %v95 = vadd.f32 %v94, 1e-12
  %v96 = vrsqrt.pop %v95
  %v97 = vmul.f32 %v87, %v96
  %98 = vst.msk [vmem:[%s2] sm:$0xf] %vm91, %v97
  // Predicated region
  $region10: #{clip_similarity.2} parent=0 // pred_check
    _
  $region11: #{clip_similarity.2} parent=0 // pred_check_branch
    %100 = sbr.rel (0) target = $region13
  $region12: #{clip_similarity.2} parent=0 // pred_region
    _
  $region13: #{clip_similarity.2} parent=0 // pred_fallthru
    _
  // Predicated region
  $region14: #{clip_similarity.2} parent=0 // pred_check
    _
  $region15: #{clip_similarity.2} parent=0 // pred_check_branch
    %102 = sbr.rel (0) target = $region17
  $region16: #{clip_similarity.2} parent=0 // pred_region
    _
  $region17: #{clip_similarity.2} parent=0 // pred_fallthru
    _

// kernel: clip_similarity.3
$region0: #{clip_similarity.3}
  #allocation0 [shape = 'u32[]', space=smem, size = 0x4, offset = 0x4, fixed_abs, tag = 'smem constant byte address 0x4 - core index']
  #allocation1 [shape = 'u32[144,128]{1,0:T(1,128)}', space=vmem, size = 0x12000, scoped, tag = 'internal scratch']
  %s0 = inlined_call_operand.vmem [shape: f32[2,768], index: 0, kind: input, shape index: {}]
  %s1 = inlined_call_operand.vmem [shape: f32[768,32], index: 1, kind: input, shape index: {}]
  %s2 = inlined_call_operand.vmem [shape: f32[1,32], index: 2, kind: input, shape index: {}]
  %s3 = inlined_call_operand.vmem [shape: f32[4,32], index: 3, kind: input, shape index: {}]
  %s4 = inlined_call_operand.vmem [shape: f32[4,2], index: 4, kind: output, shape index: {}]
  %s5 = sld [smem:[#allocation0]]
  $region26: #{clip_similarity.3} parent=0
    _
  %s7 = ssub.s32 1, %s5
  %s8 = scalar_select 0, %s7, %s5
  // Predicated region
  $region2: #{clip_similarity.3} parent=0 // pred_check
    _
  $region3: #{clip_similarity.3} parent=0 // pred_check_branch
    %10 = sbr.rel (0) target = $region5
  $region4: #{clip_similarity.3} parent=0 // pred_region
    _
  $region5: #{clip_similarity.3} parent=0 // pred_fallthru
    _
  // Predicated region
  $region6: #{clip_similarity.3} parent=0 // pred_check
    _
  $region7: #{clip_similarity.3} parent=0 // pred_check_branch
    %12 = sbr.rel (0) target = $region9
  $region8: #{clip_similarity.3} parent=0 // pred_region
    _
  $region9: #{clip_similarity.3} parent=0 // pred_fallthru
    _
  // Predicated region
  $region10: #{clip_similarity.3} parent=0 // pred_check
    _
  $region11: #{clip_similarity.3} parent=0 // pred_check_branch
    %14 = sbr.rel (0) target = $region13
  $region12: #{clip_similarity.3} parent=0 // pred_region
    _
  $region13: #{clip_similarity.3} parent=0 // pred_fallthru
    _
  // Predicated region
  $region14: #{clip_similarity.3} parent=0 // pred_check
    _
  $region15: #{clip_similarity.3} parent=0 // pred_check_branch
    %16 = sbr.rel (0) target = $region17
  $region16: #{clip_similarity.3} parent=0 // pred_region
    _
  $region17: #{clip_similarity.3} parent=0 // pred_fallthru
    _
  %v17 = vld [vmem:[%s0] sm:$0xff]
  %v18 = vld [vmem:[%s0 + $0x8] sm:$0xf]
  %v19 = vmax.f32 %v17, -1.0
  %v20 = vmax.f32 %v18, -1.0
  %v21 = vmin.f32 %v19, 1.0
  %v22 = vmin.f32 %v20, 1.0
  %v23 = vld [vmem:[%s1] sm:$0xff]
  %v24 = vld [vmem:[%s1 + $0x8] sm:$0xff]
  %v25 = vld [vmem:[%s1 + $0x10] sm:$0xff]
  %v26 = vld [vmem:[%s1 + $0x18] sm:$0xff]
  %v27 = vld [vmem:[%s1 + $0x20] sm:$0xff]
  %v28 = vld [vmem:[%s1 + $0x28] sm:$0xff]
  %v29 = vld [vmem:[%s1 + $0x30] sm:$0xff]
  %v30 = vld [vmem:[%s1 + $0x38] sm:$0xff]
  %v31 = vld [vmem:[%s1 + $0x40] sm:$0xff]
  %v32 = vld [vmem:[%s1 + $0x48] sm:$0xff]
  %v33 = vld [vmem:[%s1 + $0x50] sm:$0xff]
  %v34 = vld [vmem:[%s1 + $0x58] sm:$0xff]
  %v35 = vld [vmem:[%s1 + $0x60] sm:$0xff]
  %v36 = vld [vmem:[%s1 + $0x68] sm:$0xff]
  %v37 = vld [vmem:[%s1 + $0x70] sm:$0xff]
  %v38 = vld [vmem:[%s1 + $0x78] sm:$0xff]
  %v39 = vld [vmem:[%s1 + $0x80] sm:$0xff]
  %v40 = vld [vmem:[%s1 + $0x88] sm:$0xff]
  %v41 = vld [vmem:[%s1 + $0x90] sm:$0xff]
  %v42 = vld [vmem:[%s1 + $0x98] sm:$0xff]
  %v43 = vld [vmem:[%s1 + $0xa0] sm:$0xff]
  %v44 = vld [vmem:[%s1 + $0xa8] sm:$0xff]
  %v45 = vld [vmem:[%s1 + $0xb0] sm:$0xff]
  %v46 = vld [vmem:[%s1 + $0xb8] sm:$0xff]
  %v47 = vld [vmem:[%s1 + $0xc0] sm:$0xff]
  %v48 = vld [vmem:[%s1 + $0xc8] sm:$0xff]
  %v49 = vld [vmem:[%s1 + $0xd0] sm:$0xff]
  %v50 = vld [vmem:[%s1 + $0xd8] sm:$0xff]
  %v51 = vld [vmem:[%s1 + $0xe0] sm:$0xff]
  %v52 = vld [vmem:[%s1 + $0xe8] sm:$0xff]
  %v53 = vld [vmem:[%s1 + $0xf0] sm:$0xff]
  %v54 = vld [vmem:[%s1 + $0xf8] sm:$0xff]
  %v55 = vld [vmem:[%s1 + $0x100] sm:$0xff]
  %v56 = vld [vmem:[%s1 + $0x108] sm:$0xff]
  %v57 = vld [vmem:[%s1 + $0x110] sm:$0xff]
  %v58 = vld [vmem:[%s1 + $0x118] sm:$0xff]
  %v59 = vld [vmem:[%s1 + $0x120] sm:$0xff]
  %v60 = vld [vmem:[%s1 + $0x128] sm:$0xff]
  %v61 = vld [vmem:[%s1 + $0x130] sm:$0xff]
  %v62 = vld [vmem:[%s1 + $0x138] sm:$0xff]
  %v63 = vld [vmem:[%s1 + $0x140] sm:$0xff]
  %v64 = vld [vmem:[%s1 + $0x148] sm:$0xff]
  %v65 = vld [vmem:[%s1 + $0x150] sm:$0xff]
  %v66 = vld [vmem:[%s1 + $0x158] sm:$0xff]
  %v67 = vld [vmem:[%s1 + $0x160] sm:$0xff]
  %v68 = vld [vmem:[%s1 + $0x168] sm:$0xff]
  %v69 = vld [vmem:[%s1 + $0x170] sm:$0xff]
  %v70 = vld [vmem:[%s1 + $0x178] sm:$0xff]
  %v71 = vld [vmem:[%s1 + $0x180] sm:$0xff]
  %v72 = vld [vmem:[%s1 + $0x188] sm:$0xff]
  %v73 = vld [vmem:[%s1 + $0x190] sm:$0xff]
  %v74 = vld [vmem:[%s1 + $0x198] sm:$0xff]
  %v75 = vld [vmem:[%s1 + $0x1a0] sm:$0xff]
  %v76 = vld [vmem:[%s1 + $0x1a8] sm:$0xff]
  %v77 = vld [vmem:[%s1 + $0x1b0] sm:$0xff]
  %v78 = vld [vmem:[%s1 + $0x1b8] sm:$0xff]
  %v79 = vld [vmem:[%s1 + $0x1c0] sm:$0xff]
  %v80 = vld [vmem:[%s1 + $0x1c8] sm:$0xff]
  %v81 = vld [vmem:[%s1 + $0x1d0] sm:$0xff]
  %v82 = vld [vmem:[%s1 + $0x1d8] sm:$0xff]
  %v83 = vld [vmem:[%s1 + $0x1e0] sm:$0xff]
  %v84 = vld [vmem:[%s1 + $0x1e8] sm:$0xff]
  %v85 = vld [vmem:[%s1 + $0x1f0] sm:$0xff]
  %v86 = vld [vmem:[%s1 + $0x1f8] sm:$0xff]
  %v87 = vld [vmem:[%s1 + $0x200] sm:$0xff]
  %v88 = vld [vmem:[%s1 + $0x208] sm:$0xff]
  %v89 = vld [vmem:[%s1 + $0x210] sm:$0xff]
  %v90 = vld [vmem:[%s1 + $0x218] sm:$0xff]
  %v91 = vld [vmem:[%s1 + $0x220] sm:$0xff]
  %v92 = vld [vmem:[%s1 + $0x228] sm:$0xff]
  %v93 = vld [vmem:[%s1 + $0x230] sm:$0xff]
  %v94 = vld [vmem:[%s1 + $0x238] sm:$0xff]
  %v95 = vld [vmem:[%s1 + $0x240] sm:$0xff]
  %v96 = vld [vmem:[%s1 + $0x248] sm:$0xff]
  %v97 = vld [vmem:[%s1 + $0x250] sm:$0xff]
  %v98 = vld [vmem:[%s1 + $0x258] sm:$0xff]
  %v99 = vld [vmem:[%s1 + $0x260] sm:$0xff]
  %v100 = vld [vmem:[%s1 + $0x268] sm:$0xff]
  %v101 = vld [vmem:[%s1 + $0x270] sm:$0xff]
  %v102 = vld [vmem:[%s1 + $0x278] sm:$0xff]
  %v103 = vld [vmem:[%s1 + $0x280] sm:$0xff]
  %v104 = vld [vmem:[%s1 + $0x288] sm:$0xff]
  %v105 = vld [vmem:[%s1 + $0x290] sm:$0xff]
  %v106 = vld [vmem:[%s1 + $0x298] sm:$0xff]
  %v107 = vld [vmem:[%s1 + $0x2a0] sm:$0xff]
  %v108 = vld [vmem:[%s1 + $0x2a8] sm:$0xff]
  %v109 = vld [vmem:[%s1 + $0x2b0] sm:$0xff]
  %v110 = vld [vmem:[%s1 + $0x2b8] sm:$0xff]
  %v111 = vld [vmem:[%s1 + $0x2c0] sm:$0xff]
  %v112 = vld [vmem:[%s1 + $0x2c8] sm:$0xff]
  %v113 = vld [vmem:[%s1 + $0x2d0] sm:$0xff]
  %v114 = vld [vmem:[%s1 + $0x2d8] sm:$0xff]
  %v115 = vld [vmem:[%s1 + $0x2e0] sm:$0xff]
  %v116 = vld [vmem:[%s1 + $0x2e8] sm:$0xff]
  %v117 = vld [vmem:[%s1 + $0x2f0] sm:$0xff]
  %v118 = vld [vmem:[%s1 + $0x2f8] sm:$0xff]
  %v119 = vld [vmem:[%s2] sm:$0x1]
  %v121 = vlaneseq
  %v122 = vshrl.u32 %v121, 7
  %v123 = vsub.s32 0, %v122
  %v124 = vrot.slane %v119, %v123
  %v128 = vcombine.high %v21, %v21
  %v130 = vunpack.c.l.s4 1983009808
  %v131 = vunpack.c.0.s8 %v130
  %v132 = vlaneseq
  %v133 = vshrl.u32 %v132, 7
  %v134 = vsub.s32 %v131, %v133
  %v135 = vrot.slane %v21, %v134
  %v137 = vunpack.c.l.s4 1983009808
  %v138 = vunpack.c.0.s8 %v137
  %v139 = vlaneseq
  %v140 = vshrl.u32 %v139, 7
  %v141 = vsub.s32 %v138, %v140
  %v142 = vrot.slane %v128, %v141
  %v143 = vcombine.high %v135, %v135
  %v144 = vcombine.high %v142, %v142
  %v146 = vunpack.c.l.s4 1983009808
  %v147 = vunpack.c.0.s8 %v146
  %v148 = vlaneseq
  %v149 = vshrl.u32 %v148, 7
  %v150 = vsub.s32 %v147, %v149
  %v151 = vrot.slane %v22, %v150
  %v152 = vcombine.high %v151, %v151
  %159 = vmatprep.subr.mxu0 0.0
  %160 = vmatpush1.msra.mxu0 %v23
  %161 = vmatprep.subr.mxu0 0.0
  %162 = vmatpush1.msra.mxu0 %v24
  %163 = vmatprep.subr.mxu0 0.0
  %164 = vmatpush1.msra.mxu0 %v25
  %165 = vmatprep.subr.mxu0 0.0
  %166 = vmatpush1.msra.mxu0 %v26
  %167 = vmatprep.subr.mxu0 0.0
  %168 = vmatpush1.msra.mxu0 %v27
  %169 = vmatprep.subr.mxu0 0.0
  %170 = vmatpush1.msra.mxu0 %v28
  %171 = vmatprep.subr.mxu0 0.0
  %172 = vmatpush1.msra.mxu0 %v29
  %173 = vmatprep.subr.mxu0 0.0
  %174 = vmatpush1.msra.mxu0 %v30
  %175 = vmatprep.subr.mxu0 0.0
  %176 = vmatpush1.msra.mxu0 %v31
  %177 = vmatprep.subr.mxu0 0.0
  %178 = vmatpush1.msra.mxu0 %v32
  %179 = vmatprep.subr.mxu0 0.0
  %180 = vmatpush1.msra.mxu0 %v33
  %181 = vmatprep.subr.mxu0 0.0
  %182 = vmatpush1.msra.mxu0 %v34
  %183 = vmatprep.subr.mxu0 0.0
  %184 = vmatpush1.msra.mxu0 %v35
  %185 = vmatprep.subr.mxu0 0.0
  %186 = vmatpush1.msra.mxu0 %v36
  %187 = vmatprep.subr.mxu0 0.0
  %188 = vmatpush1.msra.mxu0 %v37
  %189 = vmatprep.subr.mxu0 0.0
  %190 = vmatpush1.msra.mxu0 %v38
  %191 = vmatprep.subr.mxu0 0.0
  %192 = vmatpush1.msra.mxu0 %v39
  %193 = vmatprep.subr.mxu0 0.0
  %194 = vmatpush1.msra.mxu0 %v40
  %195 = vmatprep.subr.mxu0 0.0
  %196 = vmatpush1.msra.mxu0 %v41
  %197 = vmatprep.subr.mxu0 0.0
  %198 = vmatpush1.msra.mxu0 %v42
  %199 = vmatprep.subr.mxu0 0.0
  %200 = vmatpush1.msra.mxu0 %v43
  %201 = vmatprep.subr.mxu0 0.0
  %202 = vmatpush1.msra.mxu0 %v44
  %203 = vmatprep.subr.mxu0 0.0
  %204 = vmatpush1.msra.mxu0 %v45
  %205 = vmatprep.subr.mxu0 0.0
  %206 = vmatpush1.msra.mxu0 %v46
  %207 = vmatprep.subr.mxu0 0.0
  %208 = vmatpush1.msra.mxu0 %v47
  %209 = vmatprep.subr.mxu0 0.0
  %210 = vmatpush1.msra.mxu0 %v48
  %211 = vmatprep.subr.mxu0 0.0
  %212 = vmatpush1.msra.mxu0 %v49
  %213 = vmatprep.subr.mxu0 0.0
  %214 = vmatpush1.msra.mxu0 %v50
  %215 = vmatprep.subr.mxu0 0.0
  %216 = vmatpush1.msra.mxu0 %v51
  %217 = vmatprep.subr.mxu0 0.0
  %218 = vmatpush1.msra.mxu0 %v52
  %219 = vmatprep.subr.mxu0 0.0
  %220 = vmatpush1.msra.mxu0 %v53
  %221 = vmatprep.subr.mxu0 0.0
  %222 = vmatpush1.msra.mxu0 %v54
  %223 = vmatprep.mubr.f32.mxu0 %v143
  %224 = vmatmul.mubr.f32.gmra.mrb[0].mxu0 %v135
  %v225 = vpop.f32.mrb[0].mxu0
  %v226 = vadd.f32 %v124, %v225
  %v227 = vpop.f32.mrb[0].mxu0
  %228 = vdwg.mxu0
  %229 = vmatprep.subr.mxu0 0.0
  %230 = vmatpush1.msra.mxu0 %v55
  %231 = vmatprep.subr.mxu0 0.0
  %232 = vmatpush1.msra.mxu0 %v56
  %233 = vmatprep.subr.mxu0 0.0
  %234 = vmatpush1.msra.mxu0 %v57
  %235 = vmatprep.subr.mxu0 0.0
  %236 = vmatpush1.msra.mxu0 %v58
  %237 = vmatprep.subr.mxu0 0.0
  %238 = vmatpush1.msra.mxu0 %v59
  %239 = vmatprep.subr.mxu0 0.0
  %240 = vmatpush1.msra.mxu0 %v60
  %241 = vmatprep.subr.mxu0 0.0
  %242 = vmatpush1.msra.mxu0 %v61
  %243 = vmatprep.subr.mxu0 0.0
  %244 = vmatpush1.msra.mxu0 %v62
  %245 = vmatprep.subr.mxu0 0.0
  %246 = vmatpush1.msra.mxu0 %v63
  %247 = vmatprep.subr.mxu0 0.0
  %248 = vmatpush1.msra.mxu0 %v64
  %249 = vmatprep.subr.mxu0 0.0
  %250 = vmatpush1.msra.mxu0 %v65
  %251 = vmatprep.subr.mxu0 0.0
  %252 = vmatpush1.msra.mxu0 %v66
  %253 = vmatprep.subr.mxu0 0.0
  %254 = vmatpush1.msra.mxu0 %v67
  %255 = vmatprep.subr.mxu0 0.0
  %256 = vmatpush1.msra.mxu0 %v68
  %257 = vmatprep.subr.mxu0 0.0
  %258 = vmatpush1.msra.mxu0 %v69
  %259 = vmatprep.subr.mxu0 0.0
  %260 = vmatpush1.msra.mxu0 %v70
  %261 = vmatprep.subr.mxu0 0.0
  %262 = vmatpush1.msra.mxu0 %v71
  %263 = vmatprep.subr.mxu0 0.0
  %264 = vmatpush1.msra.mxu0 %v72
  %265 = vmatprep.subr.mxu0 0.0
  %266 = vmatpush1.msra.mxu0 %v73
  %267 = vmatprep.subr.mxu0 0.0
  %268 = vmatpush1.msra.mxu0 %v74
  %269 = vmatprep.subr.mxu0 0.0
  %270 = vmatpush1.msra.mxu0 %v75
  %271 = vmatprep.subr.mxu0 0.0
  %272 = vmatpush1.msra.mxu0 %v76
  %273 = vmatprep.subr.mxu0 0.0
  %274 = vmatpush1.msra.mxu0 %v77
  %275 = vmatprep.subr.mxu0 0.0
  %276 = vmatpush1.msra.mxu0 %v78
  %277 = vmatprep.subr.mxu0 0.0
  %278 = vmatpush1.msra.mxu0 %v79
  %279 = vmatprep.subr.mxu0 0.0
  %280 = vmatpush1.msra.mxu0 %v80
  %281 = vmatprep.subr.mxu0 0.0
  %282 = vmatpush1.msra.mxu0 %v81
  %283 = vmatprep.subr.mxu0 0.0
  %284 = vmatpush1.msra.mxu0 %v82
  %285 = vmatprep.subr.mxu0 0.0
  %286 = vmatpush1.msra.mxu0 %v83
  %287 = vmatprep.subr.mxu0 0.0
  %288 = vmatpush1.msra.mxu0 %v84
  %289 = vmatprep.subr.mxu0 0.0
  %290 = vmatpush1.msra.mxu0 %v85
  %291 = vmatprep.subr.mxu0 0.0
  %292 = vmatpush1.msra.mxu0 %v86
  %293 = vmatprep.mubr.f32.mxu0 %v144
  %294 = vmatmul.mubr.f32.gmra.mrb[0].mxu0 %v142
  %v295 = vpop.f32.mrb[0].mxu0
  %v296 = vadd.f32 %v226, %v295
  %v297 = vpop.f32.mrb[0].mxu0
  %298 = vdwg.mxu0
  %299 = vmatprep.subr.mxu0 0.0
  %300 = vmatpush1.msra.mxu0 %v87
  %301 = vmatprep.subr.mxu0 0.0
  %302 = vmatpush1.msra.mxu0 %v88
  %303 = vmatprep.subr.mxu0 0.0
  %304 = vmatpush1.msra.mxu0 %v89
  %305 = vmatprep.subr.mxu0 0.0
  %306 = vmatpush1.msra.mxu0 %v90
  %307 = vmatprep.subr.mxu0 0.0
  %308 = vmatpush1.msra.mxu0 %v91
  %309 = vmatprep.subr.mxu0 0.0
  %310 = vmatpush1.msra.mxu0 %v92
  %311 = vmatprep.subr.mxu0 0.0
  %312 = vmatpush1.msra.mxu0 %v93
  %313 = vmatprep.subr.mxu0 0.0
  %314 = vmatpush1.msra.mxu0 %v94
  %315 = vmatprep.subr.mxu0 0.0
  %316 = vmatpush1.msra.mxu0 %v95
  %317 = vmatprep.subr.mxu0 0.0
  %318 = vmatpush1.msra.mxu0 %v96
  %319 = vmatprep.subr.mxu0 0.0
  %320 = vmatpush1.msra.mxu0 %v97
  %321 = vmatprep.subr.mxu0 0.0
  %322 = vmatpush1.msra.mxu0 %v98
  %323 = vmatprep.subr.mxu0 0.0
  %324 = vmatpush1.msra.mxu0 %v99
  %325 = vmatprep.subr.mxu0 0.0
  %326 = vmatpush1.msra.mxu0 %v100
  %327 = vmatprep.subr.mxu0 0.0
  %328 = vmatpush1.msra.mxu0 %v101
  %329 = vmatprep.subr.mxu0 0.0
  %330 = vmatpush1.msra.mxu0 %v102
  %331 = vmatprep.subr.mxu0 0.0
  %332 = vmatpush1.msra.mxu0 %v103
  %333 = vmatprep.subr.mxu0 0.0
  %334 = vmatpush1.msra.mxu0 %v104
  %335 = vmatprep.subr.mxu0 0.0
  %336 = vmatpush1.msra.mxu0 %v105
  %337 = vmatprep.subr.mxu0 0.0
  %338 = vmatpush1.msra.mxu0 %v106
  %339 = vmatprep.subr.mxu0 0.0
  %340 = vmatpush1.msra.mxu0 %v107
  %341 = vmatprep.subr.mxu0 0.0
  %342 = vmatpush1.msra.mxu0 %v108
  %343 = vmatprep.subr.mxu0 0.0
  %344 = vmatpush1.msra.mxu0 %v109
  %345 = vmatprep.subr.mxu0 0.0
  %346 = vmatpush1.msra.mxu0 %v110
  %347 = vmatprep.subr.mxu0 0.0
  %348 = vmatpush1.msra.mxu0 %v111
  %349 = vmatprep.subr.mxu0 0.0
  %350 = vmatpush1.msra.mxu0 %v112
  %351 = vmatprep.subr.mxu0 0.0
  %352 = vmatpush1.msra.mxu0 %v113
  %353 = vmatprep.subr.mxu0 0.0
  %354 = vmatpush1.msra.mxu0 %v114
  %355 = vmatprep.subr.mxu0 0.0
  %356 = vmatpush1.msra.mxu0 %v115
  %357 = vmatprep.subr.mxu0 0.0
  %358 = vmatpush1.msra.mxu0 %v116
  %359 = vmatprep.subr.mxu0 0.0
  %360 = vmatpush1.msra.mxu0 %v117
  %361 = vmatprep.subr.mxu0 0.0
  %362 = vmatpush1.msra.mxu0 %v118
  %363 = vmatprep.mubr.f32.mxu0 %v152
  %364 = vmatmul.mubr.f32.gmra.mrb[0].mxu0 %v151
  %v365 = vpop.f32.mrb[0].mxu0
  %v366 = vadd.f32 %v296, %v365
  %v367 = vpop.f32.mrb[0].mxu0
  %368 = vdwg.mxu0
  %v369 = vmul.f32 %v366, %v366
  %vm370 = vcmask 254976
  %v371 = vsel %vm370, %v369, 0.0
  %372 = vadd.xlane.f32.xlu0 %v371
  %v373 = vpop.xlane.xlu0 %372
  %v374 = vadd.f32 %v373, 1e-12
  %v375 = vrsqrt.pop %v374
  %v376 = vmul.f32 %v366, %v375
  %v377 = vld [vmem:[%s3] sm:$0xf]
  %vm378 = vcmask 261120
  %v380 = vsel %vm378, %v377, 0
  %v383 = vsel %vm378, %v376, 0
  %385 = vmatprep.subr.mxu0 0.0
  %386 = vmatpush1.xpose.msra.mxu0 %v383
  %387 = vmatprep.subr.mxu0 0.0
  %388 = vmatpush1.xpose.msra.mxu0 0.0
  %389 = vmatprep.subr.mxu0 0.0
  %390 = vmatpush1.xpose.msra.mxu0 0.0
  %391 = vmatprep.subr.mxu0 0.0
  %392 = vmatpush1.xpose.msra.mxu0 0.0
  %393 = vmatprep.subr.mxu0 0.0
  %394 = vmatpush1.xpose.msra.mxu0 0.0
  %395 = vmatprep.subr.mxu0 0.0
  %396 = vmatpush1.xpose.msra.mxu0 0.0
  %397 = vmatprep.subr.mxu0 0.0
  %398 = vmatpush1.xpose.msra.mxu0 0.0
  %399 = vmatprep.subr.mxu0 0.0
  %400 = vmatpush1.xpose.msra.mxu0 0.0
  %401 = vmatprep.subr.mxu0 0.0
  %402 = vmatpush1.xpose.msra.mxu0 0.0
  %403 = vmatprep.subr.mxu0 0.0
  %404 = vmatpush1.xpose.msra.mxu0 0.0
  %405 = vmatprep.subr.mxu0 0.0
  %406 = vmatpush1.xpose.msra.mxu0 0.0
  %407 = vmatprep.subr.mxu0 0.0
  %408 = vmatpush1.xpose.msra.mxu0 0.0
  %409 = vmatprep.subr.mxu0 0.0
  %410 = vmatpush1.xpose.msra.mxu0 0.0
  %411 = vmatprep.subr.mxu0 0.0
  %412 = vmatpush1.xpose.msra.mxu0 0.0
  %413 = vmatprep.subr.mxu0 0.0
  %414 = vmatpush1.xpose.msra.mxu0 0.0
  %415 = vmatprep.subr.mxu0 0.0
  %416 = vmatpush1.xpose.msra.mxu0 0.0
  %417 = vmatprep.subr.mxu0 0.0
  %418 = vmatpush1.xpose.msra.mxu0 0.0
  %419 = vmatprep.subr.mxu0 0.0
  %420 = vmatpush1.xpose.msra.mxu0 0.0
  %421 = vmatprep.subr.mxu0 0.0
  %422 = vmatpush1.xpose.msra.mxu0 0.0
  %423 = vmatprep.subr.mxu0 0.0
  %424 = vmatpush1.xpose.msra.mxu0 0.0
  %425 = vmatprep.subr.mxu0 0.0
  %426 = vmatpush1.xpose.msra.mxu0 0.0
  %427 = vmatprep.subr.mxu0 0.0
  %428 = vmatpush1.xpose.msra.mxu0 0.0
  %429 = vmatprep.subr.mxu0 0.0
  %430 = vmatpush1.xpose.msra.mxu0 0.0
  %431 = vmatprep.subr.mxu0 0.0
  %432 = vmatpush1.xpose.msra.mxu0 0.0
  %433 = vmatprep.subr.mxu0 0.0
  %434 = vmatpush1.xpose.msra.mxu0 0.0
  %435 = vmatprep.subr.mxu0 0.0
  %436 = vmatpush1.xpose.msra.mxu0 0.0
  %437 = vmatprep.subr.mxu0 0.0
  %438 = vmatpush1.xpose.msra.mxu0 0.0
  %439 = vmatprep.subr.mxu0 0.0
  %440 = vmatpush1.xpose.msra.mxu0 0.0
  %441 = vmatprep.subr.mxu0 0.0
  %442 = vmatpush1.xpose.msra.mxu0 0.0
  %443 = vmatprep.subr.mxu0 0.0
  %444 = vmatpush1.xpose.msra.mxu0 0.0
  %445 = vmatprep.subr.mxu0 0.0
  %446 = vmatpush1.xpose.msra.mxu0 0.0
  %447 = vmatprep.subr.mxu0 0.0
  %448 = vmatpush1.xpose.msra.mxu0 0.0
  %449 = vmatprep.mubr.f32.mxu0 0.0
  %450 = vmatmul.mubr.f32.gmra.mrb[0].mxu0 %v380
  %v451 = vpop.f32.mrb[0].mxu0
  %v452 = vadd.f32 0.0, %v451
  %v453 = vpop.f32.mrb[0].mxu0
  %454 = vdwg.mxu0
  %vm455 = vcmask 11264
  %456 = vst.msk [vmem:[%s4] sm:$0xf] %vm455, %v452
  // Predicated region
  $region18: #{clip_similarity.3} parent=0 // pred_check
    _
  $region19: #{clip_similarity.3} parent=0 // pred_check_branch
    %458 = sbr.rel (0) target = $region21
  $region20: #{clip_similarity.3} parent=0 // pred_region
    _
  $region21: #{clip_similarity.3} parent=0 // pred_fallthru
    _
  // Predicated region
  $region22: #{clip_similarity.3} parent=0 // pred_check
    _
  $region23: #{clip_similarity.3} parent=0 // pred_check_branch
    %460 = sbr.rel (0) target = $region25
  $region24: #{clip_similarity.3} parent=0 // pred_region
    _
  $region25: #{clip_similarity.3} parent=0 // pred_fallthru
    _

</llo_original>
